<compile_context>
chip_gen: v7x
topology: tpu7x:2x2x1
jax: 0.10.0
libtpu: 0.0.40
codegen_flags: <defaults>
</compile_context>

<pallas_src>
import functools

import jax
import jax.numpy as jnp
from jax.experimental import pallas as pl
from jax.experimental.pallas import tpu as pltpu


def _fold_bn(gamma, beta, mean, var, eps=1e-5):
    scale = gamma / jnp.sqrt(var + eps)
    return scale, beta - mean * scale


def _inv_res_kernel(x_ref, w1_ref, s1_ref, b1_ref, wdw_ref, dwm_ref,
                    s2_ref, b2_ref, w3_ref, s3_ref, b3_ref, *rest,
                    H, W, stride, use_res):
    if stride == 2:
        sel_ref, o_ref = rest
    else:
        (o_ref,) = rest

    HW = H * W
    bf16, f32 = jnp.bfloat16, jnp.float32
    x = x_ref[0].astype(f32)                                          # (C_in, HW)

    # ---- 1x1 expand conv (MXU) + BN1 + ReLU6 ------------------------------------
    y = jnp.dot(w1_ref[...].astype(bf16), x.astype(bf16),
                preferred_element_type=f32)                           # (C_mid, HW)
    y = jnp.clip(y * s1_ref[...] + b1_ref[...], 0.0, 6.0)

    # ---- depthwise 3x3, pad=1 (stride applied afterwards) -----------------------
    # out[p] = sum_{dh,dw} y[p + dh*W + dw] * k[dh,dw], with zero-padding masks.
    wdw = wdw_ref[...]                                                # (C_mid, 9)
    dwm = dwm_ref[...]                                                # (9, HW) {0,1}
    acc = jnp.zeros_like(y)
    for dh in (-1, 0, 1):
        for dw in (-1, 0, 1):
            k = (dh + 1) * 3 + (dw + 1)
            tap = wdw[:, k:k + 1]                                     # (C_mid, 1)
            shift = dh * W + dw
            if shift == 0:
                acc = acc + y * tap
            else:
                src = pltpu.roll(y, (-shift) % HW, 1)                 # src[p] = y[p+shift]
                acc = acc + (src * dwm[k:k + 1, :]) * tap
    acc = jnp.clip(acc * s2_ref[...] + b2_ref[...], 0.0, 6.0)         # BN2 + ReLU6

    # ---- spatial stride via one-hot selection matmul (stays lane-dense) ----------
    if stride == 2:
        acc = jnp.dot(acc.astype(bf16), sel_ref[...].astype(bf16),
                      preferred_element_type=f32)                     # (C_mid, HWo)

    # ---- 1x1 project conv (MXU) + BN3 (+ residual) --------------------------------
    z = jnp.dot(w3_ref[...].astype(bf16), acc.astype(bf16),
                preferred_element_type=f32)                           # (C_out, HWo)
    z = z * s3_ref[...] + b3_ref[...]
    if use_res:
        z = z + x
    o_ref[0] = z.astype(o_ref.dtype)


def inverted_residual(x, params, stride, eps=1e-5):
    """Fused InvertedResidual forward. x: (N, C_in, H, W), NCHW like PyTorch."""
    assert stride in (1, 2)
    N, C_in, H, W = x.shape
    C_mid = params["w1"].shape[0]
    C_out = params["w3"].shape[0]
    use_res = (stride == 1) and (C_in == C_out)
    HW = H * W
    Ho = (H - 1) // stride + 1
    Wo = (W - 1) // stride + 1
    HWo = Ho * Wo

    f32 = jnp.float32
    s1, b1 = _fold_bn(*params["bn1"], eps)
    s2, b2 = _fold_bn(*params["bn2"], eps)
    s3, b3 = _fold_bn(*params["bn3"], eps)

    # Zero-padding masks for the 9 depthwise taps, on the lane-flattened layout.
    rr = jnp.arange(H, dtype=jnp.int32)[:, None]
    cc = jnp.arange(W, dtype=jnp.int32)[None, :]
    masks = []
    for dh in (-1, 0, 1):
        for dw in (-1, 0, 1):
            ok = (rr + dh >= 0) & (rr + dh < H) & (cc + dw >= 0) & (cc + dw < W)
            masks.append(ok.reshape(HW))
    dw_mask = jnp.stack(masks, axis=0).astype(f32)                    # (9, HW)

    x2 = x.reshape(N, C_in, HW)
    inputs = [
        x2,
        params["w1"].astype(f32),                                     # (C_mid, C_in)
        s1.reshape(C_mid, 1).astype(f32), b1.reshape(C_mid, 1).astype(f32),
        params["wdw"].reshape(C_mid, 9).astype(f32),                  # (C_mid, 9)
        dw_mask,                                                      # (9, HW)
        s2.reshape(C_mid, 1).astype(f32), b2.reshape(C_mid, 1).astype(f32),
        params["w3"].astype(f32),                                     # (C_out, C_mid)
        s3.reshape(C_out, 1).astype(f32), b3.reshape(C_out, 1).astype(f32),
    ]
    in_specs = [pl.BlockSpec((1, C_in, HW), lambda n: (n, 0, 0))]
    in_specs += [pl.BlockSpec(a.shape, lambda n: (0, 0)) for a in inputs[1:]]

    if stride == 2:
        # One-hot matrix selecting even rows/cols of the stride-1 depthwise result.
        q = jnp.arange(HWo, dtype=jnp.int32)
        tgt = stride * (q // Wo) * W + stride * (q % Wo)
        sel = (jnp.arange(HW, dtype=jnp.int32)[:, None] == tgt[None, :]).astype(f32)
        inputs.append(sel)                                            # (HW, HWo)
        in_specs.append(pl.BlockSpec(sel.shape, lambda n: (0, 0)))

    flops = N * (2 * C_in * C_mid * HW + 18 * C_mid * HW + 2 * C_mid * C_out * HWo)
    if stride == 2:
        flops += N * 2 * C_mid * HW * HWo
    bytes_accessed = sum(int(a.size) * a.dtype.itemsize for a in inputs)
    bytes_accessed += N * C_out * HWo * x.dtype.itemsize

    out = pl.pallas_call(
        functools.partial(_inv_res_kernel, H=H, W=W, stride=stride, use_res=use_res),
        out_shape=jax.ShapeDtypeStruct((N, C_out, HWo), x.dtype),
        grid=(N,),
        in_specs=in_specs,
        out_specs=pl.BlockSpec((1, C_out, HWo), lambda n: (n, 0, 0)),
        compiler_params=pltpu.CompilerParams(
            dimension_semantics=("parallel",),
            vmem_limit_bytes=32 * 1024 * 1024),
        cost_estimate=pl.CostEstimate(
            flops=int(flops), transcendentals=0, bytes_accessed=int(bytes_accessed)),
    )(*inputs)
    return out.reshape(N, C_out, Ho, Wo)


def inverted_residual_ref(x, params, stride, eps=1e-5):
    """Pure-JAX reference (mirrors the kernel's bf16-operand / f32-accumulate matmuls)."""
    bf16 = jnp.bfloat16
    N, C_in, H, W = x.shape
    C_out = params["w3"].shape[0]

    def bn(v, stats):
        g, b, m, var = stats
        return ((v - m[None, :, None, None]) / jnp.sqrt(var + eps)[None, :, None, None]
                * g[None, :, None, None] + b[None, :, None, None])

    y = jnp.einsum("mc,nchw->nmhw", params["w1"].astype(bf16), x.astype(bf16),
                   preferred_element_type=jnp.float32)
    y = jnp.clip(bn(y, params["bn1"]), 0.0, 6.0)

    yp = jnp.pad(y, ((0, 0), (0, 0), (1, 1), (1, 1)))
    dw = jnp.zeros_like(y)
    for kh in range(3):
        for kw in range(3):
            dw = dw + yp[:, :, kh:kh + H, kw:kw + W] * params["wdw"][:, kh, kw][None, :, None, None]
    dw = dw[:, :, ::stride, ::stride]
    dw = jnp.clip(bn(dw, params["bn2"]), 0.0, 6.0)

    z = jnp.einsum("om,nmhw->nohw", params["w3"].astype(bf16), dw.astype(bf16),
                   preferred_element_type=jnp.float32)
    z = bn(z, params["bn3"])
    if stride == 1 and C_in == C_out:
        z = z + x
    return z


if __name__ == "__main__":
    key = jax.random.PRNGKey(0)
    k_x, k_p1, k_p2 = jax.random.split(key, 3)

    N, C_in, H, W = 2, 4, 16, 16
    x = jax.random.normal(k_x, (N, C_in, H, W), dtype=jnp.float32)

    def make_params(key, inp, oup, expand_ratio):
        mid = inp * expand_ratio
        ks = jax.random.split(key, 6)

        def bn_params(k, c):
            k1, k2, k3, k4 = jax.random.split(k, 4)
            return (1.0 + 0.1 * jax.random.normal(k1, (c,), jnp.float32),   # gamma
                    0.1 * jax.random.normal(k2, (c,), jnp.float32),          # beta
                    0.1 * jax.random.normal(k3, (c,), jnp.float32),          # running_mean
                    0.5 + jax.random.uniform(k4, (c,), jnp.float32))          # running_var

        return {
            "w1": 0.5 * jax.random.normal(ks[0], (mid, inp), jnp.float32),
            "bn1": bn_params(ks[1], mid),
            "wdw": 0.4 * jax.random.normal(ks[2], (mid, 3, 3), jnp.float32),
            "bn2": bn_params(ks[3], mid),
            "w3": 0.5 * jax.random.normal(ks[4], (oup, mid), jnp.float32),
            "bn3": bn_params(ks[5], oup),
        }

    # Case 1: stride=1, inp == oup -> residual branch (use_res_connect=True).
    p1 = make_params(k_p1, C_in, C_in, expand_ratio=2)
    y1 = jax.block_until_ready(inverted_residual(x, p1, stride=1))
    r1 = inverted_residual_ref(x, p1, stride=1)
    assert y1.shape == (N, C_in, H, W), y1.shape
    assert y1.dtype == x.dtype
    assert jnp.allclose(y1, r1, rtol=5e-2, atol=5e-2), float(jnp.max(jnp.abs(y1 - r1)))

    # Case 2: stride=2, inp != oup -> no residual, spatially downsampled output.
    p2 = make_params(k_p2, C_in, 8, expand_ratio=3)
    y2 = jax.block_until_ready(inverted_residual(x, p2, stride=2))
    r2 = inverted_residual_ref(x, p2, stride=2)
    assert y2.shape == (N, 8, H // 2, W // 2), y2.shape
    assert jnp.allclose(y2, r2, rtol=5e-2, atol=5e-2), float(jnp.max(jnp.abs(y2 - r2)))

    print("KERNEL_OK")
</pallas_src>

<mosaic_0001>
module attributes {stable_mosaic.version = 11 : i64} {
  func.func @_inv_res_kernel(%arg0: i32, %arg1: memref<1x4x256xf32, #tpu.memory_space<vmem>>, %arg2: memref<8x4xf32, #tpu.memory_space<vmem>>, %arg3: memref<8x1xf32, #tpu.memory_space<vmem>>, %arg4: memref<8x1xf32, #tpu.memory_space<vmem>>, %arg5: memref<8x9xf32, #tpu.memory_space<vmem>>, %arg6: memref<9x256xf32, #tpu.memory_space<vmem>>, %arg7: memref<8x1xf32, #tpu.memory_space<vmem>>, %arg8: memref<8x1xf32, #tpu.memory_space<vmem>>, %arg9: memref<4x8xf32, #tpu.memory_space<vmem>>, %arg10: memref<4x1xf32, #tpu.memory_space<vmem>>, %arg11: memref<4x1xf32, #tpu.memory_space<vmem>>, %arg12: memref<1x4x256xf32, #tpu.memory_space<vmem>>) attributes {dimension_semantics = [#tpu.dimension_semantics<parallel>], iteration_bounds = array<i64: 2>, scalar_prefetch = 0 : i64, scratch_operands = 0 : i64, tpu.core_type = #tpu.core_type<tc>, window_params = [{transform_indices = @transform_0, window_bounds = array<i64: 1, 4, 256>}, {pipeline_mode = #tpu.pipeline_mode<synchronous>, transform_indices = @transform_1, window_bounds = array<i64: 8, 4>}, {pipeline_mode = #tpu.pipeline_mode<synchronous>, transform_indices = @transform_2, window_bounds = array<i64: 8, 1>}, {pipeline_mode = #tpu.pipeline_mode<synchronous>, transform_indices = @transform_3, window_bounds = array<i64: 8, 1>}, {pipeline_mode = #tpu.pipeline_mode<synchronous>, transform_indices = @transform_4, window_bounds = array<i64: 8, 9>}, {pipeline_mode = #tpu.pipeline_mode<synchronous>, transform_indices = @transform_5, window_bounds = array<i64: 9, 256>}, {pipeline_mode = #tpu.pipeline_mode<synchronous>, transform_indices = @transform_6, window_bounds = array<i64: 8, 1>}, {pipeline_mode = #tpu.pipeline_mode<synchronous>, transform_indices = @transform_7, window_bounds = array<i64: 8, 1>}, {pipeline_mode = #tpu.pipeline_mode<synchronous>, transform_indices = @transform_8, window_bounds = array<i64: 4, 8>}, {pipeline_mode = #tpu.pipeline_mode<synchronous>, transform_indices = @transform_9, window_bounds = array<i64: 4, 1>}, {pipeline_mode = #tpu.pipeline_mode<synchronous>, transform_indices = @transform_10, window_bounds = array<i64: 4, 1>}, {transform_indices = @transform_11, window_bounds = array<i64: 1, 4, 256>}]} {
    %c0 = arith.constant 0 : index
    %c0_0 = arith.constant 0 : index
    %c0_1 = arith.constant 0 : index
    %0 = vector.load %arg1[%c0, %c0_0, %c0_1] : memref<1x4x256xf32, #tpu.memory_space<vmem>>, vector<1x4x256xf32>
    %1 = vector.shape_cast %0 : vector<1x4x256xf32> to vector<4x256xf32>
    %c0_2 = arith.constant 0 : index
    %c0_3 = arith.constant 0 : index
    %2 = vector.load %arg2[%c0_2, %c0_3] : memref<8x4xf32, #tpu.memory_space<vmem>>, vector<8x4xf32>
    %3 = arith.truncf %2 : vector<8x4xf32> to vector<8x4xbf16>
    %4 = arith.truncf %1 : vector<4x256xf32> to vector<4x256xbf16>
    %cst = arith.constant dense<0.000000e+00> : vector<8x256xf32>
    %5 = tpu.matmul %3, %4, %cst {dimension_numbers = #tpu.dot_dimension_numbers<[1], [0], [0], [1], [0, 0, 1, 1], [], []>} : vector<8x4xbf16>, vector<4x256xbf16>, vector<8x256xf32> -> vector<8x256xf32>
    %c0_4 = arith.constant 0 : index
    %c0_5 = arith.constant 0 : index
    %6 = vector.load %arg3[%c0_4, %c0_5] : memref<8x1xf32, #tpu.memory_space<vmem>>, vector<8x1xf32>
    %7 = vector.broadcast %6 : vector<8x1xf32> to vector<8x256xf32>
    %8 = arith.mulf %5, %7 : vector<8x256xf32>
    %c0_6 = arith.constant 0 : index
    %c0_7 = arith.constant 0 : index
    %9 = vector.load %arg4[%c0_6, %c0_7] : memref<8x1xf32, #tpu.memory_space<vmem>>, vector<8x1xf32>
    %10 = vector.broadcast %9 : vector<8x1xf32> to vector<8x256xf32>
    %11 = arith.addf %8, %10 : vector<8x256xf32>
    %cst_8 = arith.constant 0.000000e+00 : f32
    %cst_9 = arith.constant 6.000000e+00 : f32
    %12 = vector.broadcast %cst_8 : f32 to vector<8x256xf32>
    %13 = arith.maximumf %12, %11 : vector<8x256xf32>
    %14 = vector.broadcast %cst_9 : f32 to vector<8x256xf32>
    %15 = arith.minimumf %14, %13 : vector<8x256xf32>
    %c0_10 = arith.constant 0 : index
    %c0_11 = arith.constant 0 : index
    %16 = vector.load %arg5[%c0_10, %c0_11] : memref<8x9xf32, #tpu.memory_space<vmem>>, vector<8x9xf32>
    %c0_12 = arith.constant 0 : index
    %c0_13 = arith.constant 0 : index
    %17 = vector.load %arg6[%c0_12, %c0_13] : memref<9x256xf32, #tpu.memory_space<vmem>>, vector<9x256xf32>
    %cst_14 = arith.constant 0.000000e+00 : f32
    %18 = vector.broadcast %cst_14 : f32 to vector<8x256xf32>
    %19 = vector.extract_strided_slice %16 {offsets = [0, 0], sizes = [8, 1], strides = [1, 1]} : vector<8x9xf32> to vector<8x1xf32>
    %c17_i32 = arith.constant 17 : i32
    %20 = tpu.dynamic_rotate %15 by %c17_i32 dim 1 : vector<8x256xf32>, i32 -> vector<8x256xf32>
    %21 = vector.extract_strided_slice %17 {offsets = [0, 0], sizes = [1, 256], strides = [1, 1]} : vector<9x256xf32> to vector<1x256xf32>
    %22 = vector.broadcast %21 : vector<1x256xf32> to vector<8x256xf32>
    %23 = arith.mulf %20, %22 : vector<8x256xf32>
    %24 = vector.broadcast %19 : vector<8x1xf32> to vector<8x256xf32>
    %25 = arith.mulf %23, %24 : vector<8x256xf32>
    %26 = arith.addf %18, %25 : vector<8x256xf32>
    %27 = vector.extract_strided_slice %16 {offsets = [0, 1], sizes = [8, 1], strides = [1, 1]} : vector<8x9xf32> to vector<8x1xf32>
    %c16_i32 = arith.constant 16 : i32
    %28 = tpu.dynamic_rotate %15 by %c16_i32 dim 1 : vector<8x256xf32>, i32 -> vector<8x256xf32>
    %29 = vector.extract_strided_slice %17 {offsets = [1, 0], sizes = [1, 256], strides = [1, 1]} : vector<9x256xf32> to vector<1x256xf32>
    %30 = vector.broadcast %29 : vector<1x256xf32> to vector<8x256xf32>
    %31 = arith.mulf %28, %30 : vector<8x256xf32>
    %32 = vector.broadcast %27 : vector<8x1xf32> to vector<8x256xf32>
    %33 = arith.mulf %31, %32 : vector<8x256xf32>
    %34 = arith.addf %26, %33 : vector<8x256xf32>
    %35 = vector.extract_strided_slice %16 {offsets = [0, 2], sizes = [8, 1], strides = [1, 1]} : vector<8x9xf32> to vector<8x1xf32>
    %c15_i32 = arith.constant 15 : i32
    %36 = tpu.dynamic_rotate %15 by %c15_i32 dim 1 : vector<8x256xf32>, i32 -> vector<8x256xf32>
    %37 = vector.extract_strided_slice %17 {offsets = [2, 0], sizes = [1, 256], strides = [1, 1]} : vector<9x256xf32> to vector<1x256xf32>
    %38 = vector.broadcast %37 : vector<1x256xf32> to vector<8x256xf32>
    %39 = arith.mulf %36, %38 : vector<8x256xf32>
    %40 = vector.broadcast %35 : vector<8x1xf32> to vector<8x256xf32>
    %41 = arith.mulf %39, %40 : vector<8x256xf32>
    %42 = arith.addf %34, %41 : vector<8x256xf32>
    %43 = vector.extract_strided_slice %16 {offsets = [0, 3], sizes = [8, 1], strides = [1, 1]} : vector<8x9xf32> to vector<8x1xf32>
    %c1_i32 = arith.constant 1 : i32
    %44 = tpu.dynamic_rotate %15 by %c1_i32 dim 1 : vector<8x256xf32>, i32 -> vector<8x256xf32>
    %45 = vector.extract_strided_slice %17 {offsets = [3, 0], sizes = [1, 256], strides = [1, 1]} : vector<9x256xf32> to vector<1x256xf32>
    %46 = vector.broadcast %45 : vector<1x256xf32> to vector<8x256xf32>
    %47 = arith.mulf %44, %46 : vector<8x256xf32>
    %48 = vector.broadcast %43 : vector<8x1xf32> to vector<8x256xf32>
    %49 = arith.mulf %47, %48 : vector<8x256xf32>
    %50 = arith.addf %42, %49 : vector<8x256xf32>
    %51 = vector.extract_strided_slice %16 {offsets = [0, 4], sizes = [8, 1], strides = [1, 1]} : vector<8x9xf32> to vector<8x1xf32>
    %52 = vector.broadcast %51 : vector<8x1xf32> to vector<8x256xf32>
    %53 = arith.mulf %15, %52 : vector<8x256xf32>
    %54 = arith.addf %50, %53 : vector<8x256xf32>
    %55 = vector.extract_strided_slice %16 {offsets = [0, 5], sizes = [8, 1], strides = [1, 1]} : vector<8x9xf32> to vector<8x1xf32>
    %c255_i32 = arith.constant 255 : i32
    %56 = tpu.dynamic_rotate %15 by %c255_i32 dim 1 : vector<8x256xf32>, i32 -> vector<8x256xf32>
    %57 = vector.extract_strided_slice %17 {offsets = [5, 0], sizes = [1, 256], strides = [1, 1]} : vector<9x256xf32> to vector<1x256xf32>
    %58 = vector.broadcast %57 : vector<1x256xf32> to vector<8x256xf32>
    %59 = arith.mulf %56, %58 : vector<8x256xf32>
    %60 = vector.broadcast %55 : vector<8x1xf32> to vector<8x256xf32>
    %61 = arith.mulf %59, %60 : vector<8x256xf32>
    %62 = arith.addf %54, %61 : vector<8x256xf32>
    %63 = vector.extract_strided_slice %16 {offsets = [0, 6], sizes = [8, 1], strides = [1, 1]} : vector<8x9xf32> to vector<8x1xf32>
    %c241_i32 = arith.constant 241 : i32
    %64 = tpu.dynamic_rotate %15 by %c241_i32 dim 1 : vector<8x256xf32>, i32 -> vector<8x256xf32>
    %65 = vector.extract_strided_slice %17 {offsets = [6, 0], sizes = [1, 256], strides = [1, 1]} : vector<9x256xf32> to vector<1x256xf32>
    %66 = vector.broadcast %65 : vector<1x256xf32> to vector<8x256xf32>
    %67 = arith.mulf %64, %66 : vector<8x256xf32>
    %68 = vector.broadcast %63 : vector<8x1xf32> to vector<8x256xf32>
    %69 = arith.mulf %67, %68 : vector<8x256xf32>
    %70 = arith.addf %62, %69 : vector<8x256xf32>
    %71 = vector.extract_strided_slice %16 {offsets = [0, 7], sizes = [8, 1], strides = [1, 1]} : vector<8x9xf32> to vector<8x1xf32>
    %c240_i32 = arith.constant 240 : i32
    %72 = tpu.dynamic_rotate %15 by %c240_i32 dim 1 : vector<8x256xf32>, i32 -> vector<8x256xf32>
    %73 = vector.extract_strided_slice %17 {offsets = [7, 0], sizes = [1, 256], strides = [1, 1]} : vector<9x256xf32> to vector<1x256xf32>
    %74 = vector.broadcast %73 : vector<1x256xf32> to vector<8x256xf32>
    %75 = arith.mulf %72, %74 : vector<8x256xf32>
    %76 = vector.broadcast %71 : vector<8x1xf32> to vector<8x256xf32>
    %77 = arith.mulf %75, %76 : vector<8x256xf32>
    %78 = arith.addf %70, %77 : vector<8x256xf32>
    %79 = vector.extract_strided_slice %16 {offsets = [0, 8], sizes = [8, 1], strides = [1, 1]} : vector<8x9xf32> to vector<8x1xf32>
    %c239_i32 = arith.constant 239 : i32
    %80 = tpu.dynamic_rotate %15 by %c239_i32 dim 1 : vector<8x256xf32>, i32 -> vector<8x256xf32>
    %81 = vector.extract_strided_slice %17 {offsets = [8, 0], sizes = [1, 256], strides = [1, 1]} : vector<9x256xf32> to vector<1x256xf32>
    %82 = vector.broadcast %81 : vector<1x256xf32> to vector<8x256xf32>
    %83 = arith.mulf %80, %82 : vector<8x256xf32>
    %84 = vector.broadcast %79 : vector<8x1xf32> to vector<8x256xf32>
    %85 = arith.mulf %83, %84 : vector<8x256xf32>
    %86 = arith.addf %78, %85 : vector<8x256xf32>
    %c0_15 = arith.constant 0 : index
    %c0_16 = arith.constant 0 : index
    %87 = vector.load %arg7[%c0_15, %c0_16] : memref<8x1xf32, #tpu.memory_space<vmem>>, vector<8x1xf32>
    %88 = vector.broadcast %87 : vector<8x1xf32> to vector<8x256xf32>
    %89 = arith.mulf %86, %88 : vector<8x256xf32>
    %c0_17 = arith.constant 0 : index
    %c0_18 = arith.constant 0 : index
    %90 = vector.load %arg8[%c0_17, %c0_18] : memref<8x1xf32, #tpu.memory_space<vmem>>, vector<8x1xf32>
    %91 = vector.broadcast %90 : vector<8x1xf32> to vector<8x256xf32>
    %92 = arith.addf %89, %91 : vector<8x256xf32>
    %cst_19 = arith.constant 0.000000e+00 : f32
    %cst_20 = arith.constant 6.000000e+00 : f32
    %93 = vector.broadcast %cst_19 : f32 to vector<8x256xf32>
    %94 = arith.maximumf %93, %92 : vector<8x256xf32>
    %95 = vector.broadcast %cst_20 : f32 to vector<8x256xf32>
    %96 = arith.minimumf %95, %94 : vector<8x256xf32>
    %c0_21 = arith.constant 0 : index
    %c0_22 = arith.constant 0 : index
    %97 = vector.load %arg9[%c0_21, %c0_22] : memref<4x8xf32, #tpu.memory_space<vmem>>, vector<4x8xf32>
    %98 = arith.truncf %97 : vector<4x8xf32> to vector<4x8xbf16>
    %99 = arith.truncf %96 : vector<8x256xf32> to vector<8x256xbf16>
    %cst_23 = arith.constant dense<0.000000e+00> : vector<4x256xf32>
    %100 = tpu.matmul %98, %99, %cst_23 {dimension_numbers = #tpu.dot_dimension_numbers<[1], [0], [0], [1], [0, 0, 1, 1], [], []>} : vector<4x8xbf16>, vector<8x256xbf16>, vector<4x256xf32> -> vector<4x256xf32>
    %c0_24 = arith.constant 0 : index
    %c0_25 = arith.constant 0 : index
    %101 = vector.load %arg10[%c0_24, %c0_25] : memref<4x1xf32, #tpu.memory_space<vmem>>, vector<4x1xf32>
    %102 = vector.broadcast %101 : vector<4x1xf32> to vector<4x256xf32>
    %103 = arith.mulf %100, %102 : vector<4x256xf32>
    %c0_26 = arith.constant 0 : index
    %c0_27 = arith.constant 0 : index
    %104 = vector.load %arg11[%c0_26, %c0_27] : memref<4x1xf32, #tpu.memory_space<vmem>>, vector<4x1xf32>
    %105 = vector.broadcast %104 : vector<4x1xf32> to vector<4x256xf32>
    %106 = arith.addf %103, %105 : vector<4x256xf32>
    %107 = arith.addf %106, %1 : vector<4x256xf32>
    %c0_28 = arith.constant 0 : index
    %c0_29 = arith.constant 0 : index
    %c0_30 = arith.constant 0 : index
    %108 = vector.load %arg12[%c0_28, %c0_29, %c0_30] : memref<1x4x256xf32, #tpu.memory_space<vmem>>, vector<1x4x256xf32>
    %109 = vector.shape_cast %108 : vector<1x4x256xf32> to vector<4x256xf32>
    %110 = vector.shape_cast %107 : vector<4x256xf32> to vector<1x4x256xf32>
    tpu.vector_store %arg12[%c0_28, %c0_29, %c0_30], %110 {strides = array<i32>} : memref<1x4x256xf32, #tpu.memory_space<vmem>>, vector<1x4x256xf32>,
    return
  }
  func.func @transform_0(%arg0: i32) -> (i32, i32, i32) {
    %c0_i32 = arith.constant 0 : i32
    %c0_i32_0 = arith.constant 0 : i32
    %c0_i32_1 = arith.constant 0 : i32
    return %arg0, %c0_i32, %c0_i32_0 : i32, i32, i32
  }
  func.func @transform_1(%arg0: i32) -> (i32, i32) {
    %c0_i32 = arith.constant 0 : i32
    %c0_i32_0 = arith.constant 0 : i32
    %c0_i32_1 = arith.constant 0 : i32
    return %c0_i32, %c0_i32_0 : i32, i32
  }
  func.func @transform_2(%arg0: i32) -> (i32, i32) {
    %c0_i32 = arith.constant 0 : i32
    %c0_i32_0 = arith.constant 0 : i32
    %c0_i32_1 = arith.constant 0 : i32
    return %c0_i32, %c0_i32_0 : i32, i32
  }
  func.func @transform_3(%arg0: i32) -> (i32, i32) {
    %c0_i32 = arith.constant 0 : i32
    %c0_i32_0 = arith.constant 0 : i32
    %c0_i32_1 = arith.constant 0 : i32
    return %c0_i32, %c0_i32_0 : i32, i32
  }
  func.func @transform_4(%arg0: i32) -> (i32, i32) {
    %c0_i32 = arith.constant 0 : i32
    %c0_i32_0 = arith.constant 0 : i32
    %c0_i32_1 = arith.constant 0 : i32
    return %c0_i32, %c0_i32_0 : i32, i32
  }
  func.func @transform_5(%arg0: i32) -> (i32, i32) {
    %c0_i32 = arith.constant 0 : i32
    %c0_i32_0 = arith.constant 0 : i32
    %c0_i32_1 = arith.constant 0 : i32
    return %c0_i32, %c0_i32_0 : i32, i32
  }
  func.func @transform_6(%arg0: i32) -> (i32, i32) {
    %c0_i32 = arith.constant 0 : i32
    %c0_i32_0 = arith.constant 0 : i32
    %c0_i32_1 = arith.constant 0 : i32
    return %c0_i32, %c0_i32_0 : i32, i32
  }
  func.func @transform_7(%arg0: i32) -> (i32, i32) {
    %c0_i32 = arith.constant 0 : i32
    %c0_i32_0 = arith.constant 0 : i32
    %c0_i32_1 = arith.constant 0 : i32
    return %c0_i32, %c0_i32_0 : i32, i32
  }
  func.func @transform_8(%arg0: i32) -> (i32, i32) {
    %c0_i32 = arith.constant 0 : i32
    %c0_i32_0 = arith.constant 0 : i32
    %c0_i32_1 = arith.constant 0 : i32
    return %c0_i32, %c0_i32_0 : i32, i32
  }
  func.func @transform_9(%arg0: i32) -> (i32, i32) {
    %c0_i32 = arith.constant 0 : i32
    %c0_i32_0 = arith.constant 0 : i32
    %c0_i32_1 = arith.constant 0 : i32
    return %c0_i32, %c0_i32_0 : i32, i32
  }
  func.func @transform_10(%arg0: i32) -> (i32, i32) {
    %c0_i32 = arith.constant 0 : i32
    %c0_i32_0 = arith.constant 0 : i32
    %c0_i32_1 = arith.constant 0 : i32
    return %c0_i32, %c0_i32_0 : i32, i32
  }
  func.func @transform_11(%arg0: i32) -> (i32, i32, i32) {
    %c0_i32 = arith.constant 0 : i32
    %c0_i32_0 = arith.constant 0 : i32
    %c0_i32_1 = arith.constant 0 : i32
    return %arg0, %c0_i32, %c0_i32_0 : i32, i32, i32
  }
}

</mosaic_0001>

<llo_original>
// kernel: tpu_custom_call.1
$region0: #{tpu_custom_call.1}
  #allocation0 [shape = 'u32[]', space=smem, size = 0x4, offset = 0x4, fixed_abs, tag = 'smem constant byte address 0x4 - core index']
  #allocation1 [shape = 'u32[144,128]{1,0:T(1,128)}', space=vmem, size = 0x12000, scoped, tag = 'internal scratch']
  %s0 = inlined_call_operand.vmem [shape: f32[2,4,256], index: 0, kind: input, shape index: {}]
  %s1 = inlined_call_operand.vmem [shape: f32[8,4], index: 1, kind: input, shape index: {}]
  %s2 = inlined_call_operand.vmem [shape: f32[8,1], index: 2, kind: input, shape index: {}]
  %s3 = inlined_call_operand.vmem [shape: f32[8,1], index: 3, kind: input, shape index: {}]
  %s4 = inlined_call_operand.vmem [shape: f32[8,9], index: 4, kind: input, shape index: {}]
  %s5 = inlined_call_operand.vmem [shape: f32[9,256], index: 5, kind: input, shape index: {}]
  %s6 = inlined_call_operand.vmem [shape: f32[8,1], index: 6, kind: input, shape index: {}]
  %s7 = inlined_call_operand.vmem [shape: f32[8,1], index: 7, kind: input, shape index: {}]
  %s8 = inlined_call_operand.vmem [shape: f32[4,8], index: 8, kind: input, shape index: {}]
  %s9 = inlined_call_operand.vmem [shape: f32[4,1], index: 9, kind: input, shape index: {}]
  %s10 = inlined_call_operand.vmem [shape: f32[4,1], index: 10, kind: input, shape index: {}]
  %s11 = inlined_call_operand.hbm [shape: f32[2,4,256], index: 11, kind: output, shape index: {}]
  %s12 = sld [smem:[#allocation0]]
  $region77: #{tpu_custom_call.1} parent=0
    _
  %s14 = ssub.s32 1, %s12
  %s15 = scalar_select 0, %s14, %s12
  $region1: #{tpu_custom_call.1} parent=0
    #allocation2 [shape = 'u8[8192]{0}', space=vmem, size = 0x2000, scoped, tag = 'output window, operand 0']
    #allocation3 [shape = 's32[2]{0}', space=sflag, size = 0x8, scoped, tag = 'scoped memory for tpu_custom_call.1']
    %16 = vsyncpa [#allocation3], 0
    %s17 = scalar_lea.sflag [#allocation3], 1
    %18 = vsyncpa %s17, 0
    loop: start=0, step=1, limit=4
    $region2: #{tpu_custom_call.1} parent=1 // loop_pre_header
      _
    $region3: #{tpu_custom_call.1} parent=1 // loop_header
      %s20 = sphi 0, %s24
      %p21 = scmp.ge.s32.totalorder %s20, 4
      %s30 = sphi 0, %s32
      %s33 = sphi 0, %s30
      %s34 = sphi 0, %s33
      %s50 = sphi 0, %s34
      %s54 = sphi 0, %s54
      %s56 = sphi 0, %s54
      %s57 = sphi 0, %s56
      %s71 = sphi 0, %s57
      %s75 = sphi 0, %s75
      %s77 = sphi 0, %s75
      %s78 = sphi 0, %s77
      %s92 = sphi 0, %s78
      %s96 = sphi 0, %s96
      %s98 = sphi 0, %s96
      %s99 = sphi 0, %s98
      %s113 = sphi 0, %s99
      %s117 = sphi 0, %s117
      %s119 = sphi 0, %s117
      %s120 = sphi 0, %s119
      %s134 = sphi 0, %s120
      %s138 = sphi 0, %s138
      %s140 = sphi 0, %s138
      %s141 = sphi 0, %s140
      %s155 = sphi 0, %s141
      %s159 = sphi 0, %s159
      %s161 = sphi 0, %s159
      %s162 = sphi 0, %s161
      %s176 = sphi 0, %s162
      %s180 = sphi 0, %s180
      %s182 = sphi 0, %s180
      %s183 = sphi 0, %s182
      %s197 = sphi 0, %s183
      %s201 = sphi 0, %s201
      %s203 = sphi 0, %s201
      %s204 = sphi 0, %s203
      %s218 = sphi 0, %s204
      %s222 = sphi 0, %s222
      %s224 = sphi 0, %s222
      %s225 = sphi 0, %s224
      %s239 = sphi 0, %s225
      %s243 = sphi 0, %s243
      %s245 = sphi 0, %s243
      %s246 = sphi 0, %s245
      %s260 = sphi 0, %s246
      %s266 = sphi 0, %s268
      %s269 = sphi 0, %s266
      %s270 = sphi 0, %s269
      %s286 = sphi 0, %s270
    $region4: #{tpu_custom_call.1} parent=1 // loop_header_branch
      %23 = sbr.rel (%p21) target = $region8
    $region5: #{tpu_custom_call.1} parent=1 // loop_body
      %s25 = ssub.s32 %s20, 1
      %s26 = ssub.s32 %s20, 2
      %s27 = sadd.s32 %s20, 1
      %s28 = ssub.s32 %s20, %s27
      %p29 = scmp.eq.s32.totalorder %s28, 0
      %s31 = sadd.s32 %s30, 1
      %s32 = scalar_select %p29, %s30, %s31
      %p35 = pneg %p29
      %p36 = scmp.eq.s32.totalorder %s20, 1
      %p37 = por %p35, %p36
      %p38 = scmp.ne.s32.totalorder %s30, %s33
      %p39 = scmp.eq.s32.totalorder %s20, 0
      %p40 = por %p38, %p39
      %p41 = scmp.ne.s32.totalorder %s30, %s33
      %p42 = scmp.eq.s32.totalorder %s25, 1
      %p43 = por %p41, %p42
      %p44 = scmp.ne.s32.totalorder %s33, %s34
      %p45 = scmp.eq.s32.totalorder %s25, 0
      %p46 = por %p44, %p45
      %p47 = scmp.ne.s32.totalorder %s33, %s34
      %p48 = scmp.eq.s32.totalorder %s26, 1
      %p49 = por %p47, %p48
      %p51 = scmp.ne.s32.totalorder %s34, %s50
      %p52 = scmp.eq.s32.totalorder %s26, 0
      %p53 = por %p51, %p52
      %s55 = sadd.s32 %s54, 1
      %p58 = scmp.eq.s32.totalorder %s20, 1
      %p59 = scmp.ne.s32.totalorder %s54, %s56
      %p60 = scmp.eq.s32.totalorder %s20, 0
      %p61 = por %p59, %p60
      %p62 = scmp.ne.s32.totalorder %s54, %s56
      %p63 = scmp.eq.s32.totalorder %s25, 1
      %p64 = por %p62, %p63
      %p65 = scmp.ne.s32.totalorder %s56, %s57
      %p66 = scmp.eq.s32.totalorder %s25, 0
      %p67 = por %p65, %p66
      %p68 = scmp.ne.s32.totalorder %s56, %s57
      %p69 = scmp.eq.s32.totalorder %s26, 1
      %p70 = por %p68, %p69
      %p72 = scmp.ne.s32.totalorder %s57, %s71
      %p73 = scmp.eq.s32.totalorder %s26, 0
      %p74 = por %p72, %p73
      %s76 = sadd.s32 %s75, 1
      %p79 = scmp.eq.s32.totalorder %s20, 1
      %p80 = scmp.ne.s32.totalorder %s75, %s77
      %p81 = scmp.eq.s32.totalorder %s20, 0
      %p82 = por %p80, %p81
      %p83 = scmp.ne.s32.totalorder %s75, %s77
      %p84 = scmp.eq.s32.totalorder %s25, 1
      %p85 = por %p83, %p84
      %p86 = scmp.ne.s32.totalorder %s77, %s78
      %p87 = scmp.eq.s32.totalorder %s25, 0
      %p88 = por %p86, %p87
      %p89 = scmp.ne.s32.totalorder %s77, %s78
      %p90 = scmp.eq.s32.totalorder %s26, 1
      %p91 = por %p89, %p90
      %p93 = scmp.ne.s32.totalorder %s78, %s92
      %p94 = scmp.eq.s32.totalorder %s26, 0
      %p95 = por %p93, %p94
      %s97 = sadd.s32 %s96, 1
      %p100 = scmp.eq.s32.totalorder %s20, 1
      %p101 = scmp.ne.s32.totalorder %s96, %s98
      %p102 = scmp.eq.s32.totalorder %s20, 0
      %p103 = por %p101, %p102
      %p104 = scmp.ne.s32.totalorder %s96, %s98
      %p105 = scmp.eq.s32.totalorder %s25, 1
      %p106 = por %p104, %p105
      %p107 = scmp.ne.s32.totalorder %s98, %s99
      %p108 = scmp.eq.s32.totalorder %s25, 0
      %p109 = por %p107, %p108
      %p110 = scmp.ne.s32.totalorder %s98, %s99
      %p111 = scmp.eq.s32.totalorder %s26, 1
      %p112 = por %p110, %p111
      %p114 = scmp.ne.s32.totalorder %s99, %s113
      %p115 = scmp.eq.s32.totalorder %s26, 0
      %p116 = por %p114, %p115
      %s118 = sadd.s32 %s117, 1
      %p121 = scmp.eq.s32.totalorder %s20, 1
      %p122 = scmp.ne.s32.totalorder %s117, %s119
      %p123 = scmp.eq.s32.totalorder %s20, 0
      %p124 = por %p122, %p123
      %p125 = scmp.ne.s32.totalorder %s117, %s119
      %p126 = scmp.eq.s32.totalorder %s25, 1
      %p127 = por %p125, %p126
      %p128 = scmp.ne.s32.totalorder %s119, %s120
      %p129 = scmp.eq.s32.totalorder %s25, 0
      %p130 = por %p128, %p129
      %p131 = scmp.ne.s32.totalorder %s119, %s120
      %p132 = scmp.eq.s32.totalorder %s26, 1
      %p133 = por %p131, %p132
      %p135 = scmp.ne.s32.totalorder %s120, %s134
      %p136 = scmp.eq.s32.totalorder %s26, 0
      %p137 = por %p135, %p136
      %s139 = sadd.s32 %s138, 1
      %p142 = scmp.eq.s32.totalorder %s20, 1
      %p143 = scmp.ne.s32.totalorder %s138, %s140
      %p144 = scmp.eq.s32.totalorder %s20, 0
      %p145 = por %p143, %p144
      %p146 = scmp.ne.s32.totalorder %s138, %s140
      %p147 = scmp.eq.s32.totalorder %s25, 1
      %p148 = por %p146, %p147
      %p149 = scmp.ne.s32.totalorder %s140, %s141
      %p150 = scmp.eq.s32.totalorder %s25, 0
      %p151 = por %p149, %p150
      %p152 = scmp.ne.s32.totalorder %s140, %s141
      %p153 = scmp.eq.s32.totalorder %s26, 1
      %p154 = por %p152, %p153
      %p156 = scmp.ne.s32.totalorder %s141, %s155
      %p157 = scmp.eq.s32.totalorder %s26, 0
      %p158 = por %p156, %p157
      %s160 = sadd.s32 %s159, 1
      %p163 = scmp.eq.s32.totalorder %s20, 1
      %p164 = scmp.ne.s32.totalorder %s159, %s161
      %p165 = scmp.eq.s32.totalorder %s20, 0
      %p166 = por %p164, %p165
      %p167 = scmp.ne.s32.totalorder %s159, %s161
      %p168 = scmp.eq.s32.totalorder %s25, 1
      %p169 = por %p167, %p168
      %p170 = scmp.ne.s32.totalorder %s161, %s162
      %p171 = scmp.eq.s32.totalorder %s25, 0
      %p172 = por %p170, %p171
      %p173 = scmp.ne.s32.totalorder %s161, %s162
      %p174 = scmp.eq.s32.totalorder %s26, 1
      %p175 = por %p173, %p174
      %p177 = scmp.ne.s32.totalorder %s162, %s176
      %p178 = scmp.eq.s32.totalorder %s26, 0
      %p179 = por %p177, %p178
      %s181 = sadd.s32 %s180, 1
      %p184 = scmp.eq.s32.totalorder %s20, 1
      %p185 = scmp.ne.s32.totalorder %s180, %s182
      %p186 = scmp.eq.s32.totalorder %s20, 0
      %p187 = por %p185, %p186
      %p188 = scmp.ne.s32.totalorder %s180, %s182
      %p189 = scmp.eq.s32.totalorder %s25, 1
      %p190 = por %p188, %p189
      %p191 = scmp.ne.s32.totalorder %s182, %s183
      %p192 = scmp.eq.s32.totalorder %s25, 0
      %p193 = por %p191, %p192
      %p194 = scmp.ne.s32.totalorder %s182, %s183
      %p195 = scmp.eq.s32.totalorder %s26, 1
      %p196 = por %p194, %p195
      %p198 = scmp.ne.s32.totalorder %s183, %s197
      %p199 = scmp.eq.s32.totalorder %s26, 0
      %p200 = por %p198, %p199
      %s202 = sadd.s32 %s201, 1
      %p205 = scmp.eq.s32.totalorder %s20, 1
      %p206 = scmp.ne.s32.totalorder %s201, %s203
      %p207 = scmp.eq.s32.totalorder %s20, 0
      %p208 = por %p206, %p207
      %p209 = scmp.ne.s32.totalorder %s201, %s203
      %p210 = scmp.eq.s32.totalorder %s25, 1
      %p211 = por %p209, %p210
      %p212 = scmp.ne.s32.totalorder %s203, %s204
      %p213 = scmp.eq.s32.totalorder %s25, 0
      %p214 = por %p212, %p213
      %p215 = scmp.ne.s32.totalorder %s203, %s204
      %p216 = scmp.eq.s32.totalorder %s26, 1
      %p217 = por %p215, %p216
      %p219 = scmp.ne.s32.totalorder %s204, %s218
      %p220 = scmp.eq.s32.totalorder %s26, 0
      %p221 = por %p219, %p220
      %s223 = sadd.s32 %s222, 1
      %p226 = scmp.eq.s32.totalorder %s20, 1
      %p227 = scmp.ne.s32.totalorder %s222, %s224
      %p228 = scmp.eq.s32.totalorder %s20, 0
      %p229 = por %p227, %p228
      %p230 = scmp.ne.s32.totalorder %s222, %s224
      %p231 = scmp.eq.s32.totalorder %s25, 1
      %p232 = por %p230, %p231
      %p233 = scmp.ne.s32.totalorder %s224, %s225
      %p234 = scmp.eq.s32.totalorder %s25, 0
      %p235 = por %p233, %p234
      %p236 = scmp.ne.s32.totalorder %s224, %s225
      %p237 = scmp.eq.s32.totalorder %s26, 1
      %p238 = por %p236, %p237
      %p240 = scmp.ne.s32.totalorder %s225, %s239
      %p241 = scmp.eq.s32.totalorder %s26, 0
      %p242 = por %p240, %p241
      %s244 = sadd.s32 %s243, 1
      %p247 = scmp.eq.s32.totalorder %s20, 1
      %p248 = scmp.ne.s32.totalorder %s243, %s245
      %p249 = scmp.eq.s32.totalorder %s20, 0
      %p250 = por %p248, %p249
      %p251 = scmp.ne.s32.totalorder %s243, %s245
      %p252 = scmp.eq.s32.totalorder %s25, 1
      %p253 = por %p251, %p252
      %p254 = scmp.ne.s32.totalorder %s245, %s246
      %p255 = scmp.eq.s32.totalorder %s25, 0
      %p256 = por %p254, %p255
      %p257 = scmp.ne.s32.totalorder %s245, %s246
      %p258 = scmp.eq.s32.totalorder %s26, 1
      %p259 = por %p257, %p258
      %p261 = scmp.ne.s32.totalorder %s246, %s260
      %p262 = scmp.eq.s32.totalorder %s26, 0
      %p263 = por %p261, %p262
      %s264 = ssub.s32 %s20, %s27
      %p265 = scmp.eq.s32.totalorder %s264, 0
      %s267 = sadd.s32 %s266, 1
      %s268 = scalar_select %p265, %s266, %s267
      %p271 = pneg %p265
      %p272 = scmp.eq.s32.totalorder %s20, 1
      %p273 = por %p271, %p272
      %p274 = scmp.ne.s32.totalorder %s266, %s269
      %p275 = scmp.eq.s32.totalorder %s20, 0
      %p276 = por %p274, %p275
      %p277 = scmp.ne.s32.totalorder %s266, %s269
      %p278 = scmp.eq.s32.totalorder %s25, 1
      %p279 = por %p277, %p278
      %p280 = scmp.ne.s32.totalorder %s269, %s270
      %p281 = scmp.eq.s32.totalorder %s25, 0
      %p282 = por %p280, %p281
      %p283 = scmp.ne.s32.totalorder %s269, %s270
      %p284 = scmp.eq.s32.totalorder %s26, 1
      %p285 = por %p283, %p284
      %p287 = scmp.ne.s32.totalorder %s270, %s286
      %p288 = scmp.eq.s32.totalorder %s26, 0
      %p289 = por %p287, %p288
      %p290 = scmp.le.s32.totalorder 1, %s20
      %p291 = scmp.lt.s32.totalorder %s20, 3
      %p292 = pnand %p290, %p291
      %p293 = pneg %p292
      // Predicated region
      $region9: #{tpu_custom_call.1} parent=5 // pred_check
        _
      $region10: #{tpu_custom_call.1} parent=5 // pred_check_branch
        %295 = sbr.rel (%p292) target = $region12
      $region11: #{tpu_custom_call.1} parent=5 // pred_region
        %s296 = ssub.s32 %s20, 1
        // Predicated region
        $region13: #{tpu_custom_call.1} parent=11 // pred_check
          %p297 = pneg %p67
        $region14: #{tpu_custom_call.1} parent=11 // pred_check_branch
          %299 = sbr.rel (%p297) target = $region16
        $region15: #{tpu_custom_call.1} parent=11 // pred_region
          _
        $region16: #{tpu_custom_call.1} parent=11 // pred_fallthru
          _
        // Predicated region
        $region17: #{tpu_custom_call.1} parent=11 // pred_check
          %p300 = pneg %p88
        $region18: #{tpu_custom_call.1} parent=11 // pred_check_branch
          %302 = sbr.rel (%p300) target = $region20
        $region19: #{tpu_custom_call.1} parent=11 // pred_region
          _
        $region20: #{tpu_custom_call.1} parent=11 // pred_fallthru
          _
        // Predicated region
        $region21: #{tpu_custom_call.1} parent=11 // pred_check
          %p303 = pneg %p109
        $region22: #{tpu_custom_call.1} parent=11 // pred_check_branch
          %305 = sbr.rel (%p303) target = $region24
        $region23: #{tpu_custom_call.1} parent=11 // pred_region
          _
        $region24: #{tpu_custom_call.1} parent=11 // pred_fallthru
          _
        // Predicated region
        $region25: #{tpu_custom_call.1} parent=11 // pred_check
          %p306 = pneg %p130
        $region26: #{tpu_custom_call.1} parent=11 // pred_check_branch
          %308 = sbr.rel (%p306) target = $region28
        $region27: #{tpu_custom_call.1} parent=11 // pred_region
          _
        $region28: #{tpu_custom_call.1} parent=11 // pred_fallthru
          _
        // Predicated region
        $region29: #{tpu_custom_call.1} parent=11 // pred_check
          %p309 = pneg %p151
        $region30: #{tpu_custom_call.1} parent=11 // pred_check_branch
          %311 = sbr.rel (%p309) target = $region32
        $region31: #{tpu_custom_call.1} parent=11 // pred_region
          _
        $region32: #{tpu_custom_call.1} parent=11 // pred_fallthru
          _
        // Predicated region
        $region33: #{tpu_custom_call.1} parent=11 // pred_check
          %p312 = pneg %p172
        $region34: #{tpu_custom_call.1} parent=11 // pred_check_branch
          %314 = sbr.rel (%p312) target = $region36
        $region35: #{tpu_custom_call.1} parent=11 // pred_region
          _
        $region36: #{tpu_custom_call.1} parent=11 // pred_fallthru
          _
        // Predicated region
        $region37: #{tpu_custom_call.1} parent=11 // pred_check
          %p315 = pneg %p193
        $region38: #{tpu_custom_call.1} parent=11 // pred_check_branch
          %317 = sbr.rel (%p315) target = $region40
        $region39: #{tpu_custom_call.1} parent=11 // pred_region
          _
        $region40: #{tpu_custom_call.1} parent=11 // pred_fallthru
          _
        // Predicated region
        $region41: #{tpu_custom_call.1} parent=11 // pred_check
          %p318 = pneg %p214
        $region42: #{tpu_custom_call.1} parent=11 // pred_check_branch
          %320 = sbr.rel (%p318) target = $region44
        $region43: #{tpu_custom_call.1} parent=11 // pred_region
          _
        $region44: #{tpu_custom_call.1} parent=11 // pred_fallthru
          _
        // Predicated region
        $region45: #{tpu_custom_call.1} parent=11 // pred_check
          %p321 = pneg %p235
        $region46: #{tpu_custom_call.1} parent=11 // pred_check_branch
          %323 = sbr.rel (%p321) target = $region48
        $region47: #{tpu_custom_call.1} parent=11 // pred_region
          _
        $region48: #{tpu_custom_call.1} parent=11 // pred_fallthru
          _
        // Predicated region
        $region49: #{tpu_custom_call.1} parent=11 // pred_check
          %p324 = pneg %p256
        $region50: #{tpu_custom_call.1} parent=11 // pred_check_branch
          %326 = sbr.rel (%p324) target = $region52
        $region51: #{tpu_custom_call.1} parent=11 // pred_region
          _
        $region52: #{tpu_custom_call.1} parent=11 // pred_fallthru
          _
      $region12: #{tpu_custom_call.1} parent=5 // pred_fallthru
        _
      %p327 = scmp.lt.s32.totalorder %s20, 2
      // Predicated region
      $region53: #{tpu_custom_call.1} parent=5 // pred_check
        %p328 = pneg %p327
      $region54: #{tpu_custom_call.1} parent=5 // pred_check_branch
        %330 = sbr.rel (%p328) target = $region56
      $region55: #{tpu_custom_call.1} parent=5 // pred_region
        // Predicated region
        $region57: #{tpu_custom_call.1} parent=55 // pred_check
          %p331 = pneg %p40
        $region58: #{tpu_custom_call.1} parent=55 // pred_check_branch
          %333 = sbr.rel (%p331) target = $region60
        $region59: #{tpu_custom_call.1} parent=55 // pred_region
          %p334 = scmp.lt.s32.totalorder %s20, 1
          %s335 = scalar_select %p334, %s20, 1
          %s336 = smul.addr %s335, 2
          %s337 = smul.addr %s336, 4
          %s338 = scalar_lea.vmem %s0, %s337
        $region60: #{tpu_custom_call.1} parent=55 // pred_fallthru
          _
      $region56: #{tpu_custom_call.1} parent=5 // pred_fallthru
        _
      %p339 = scmp.le.s32.totalorder 1, %s20
      %p340 = scmp.lt.s32.totalorder %s20, 3
      %p341 = pnand %p339, %p340
      %p342 = pneg %p341
      // Predicated region
      $region61: #{tpu_custom_call.1} parent=5 // pred_check
        _
      $region62: #{tpu_custom_call.1} parent=5 // pred_check_branch
        %344 = sbr.rel (%p341) target = $region64
      $region63: #{tpu_custom_call.1} parent=5 // pred_region
        %s345 = ssub.s32 %s20, 1
        %p346 = scmp.lt.s32.totalorder %s25, 1
        %s347 = scalar_select %p346, %s25, 1
        %s348 = smul.addr %s347, 2
        %s349 = smul.addr %s348, 4
        %s350 = scalar_lea.vmem %s0, %s349
        %p351 = pneg %p46
        %p352 = pneg %p43
        %p353 = pneg %p67
        %p354 = pneg %p64
        %p355 = pneg %p88
        %p356 = pneg %p85
        %p357 = pneg %p109
        %p358 = pneg %p106
        %p359 = pneg %p130
        %p360 = pneg %p127
        %p361 = pneg %p151
        %p362 = pneg %p148
        %p363 = pneg %p172
        %p364 = pneg %p169
        %p365 = pneg %p193
        %p366 = pneg %p190
        %p367 = pneg %p214
        %p368 = pneg %p211
        %p369 = pneg %p235
        %p370 = pneg %p232
        %p371 = pneg %p256
        %p372 = pneg %p253
        %p373 = pneg %p282
        %p374 = pneg %p279
        %s375 = sand.u32 %s269, 1
        %s376 = scalar_lea.sflag [#allocation3], %s375
        %s377 = sand.u32 %s269, 1
        %s378 = smul.addr %s377, 8
        %s379 = scalar_lea.vmem [#allocation2], %s378
        %p380 = scmp.lt.s32.totalorder %s25, 1
        %s381 = scalar_select %p380, %s25, 1
        %s382 = smul.addr %s381, 2
        %s383 = smul.addr %s382, 4
        %s384 = scalar_lea.vmem %s0, %s383
        %v386 = vld [vmem:[%s384] sm:$0xff]
        %v387 = vld [vmem:[%s1] sm:$0xff]
        %v388 = vpack.c.bf16 %v387, %v387
        %v390 = vcombine.high %v386, %v386
        %v392 = vpack.c.bf16 %v386, %v386
        %v393 = vpack.c.bf16 %v390, %v390
        %vm394 = vcmask 31744
        %v396 = vsel %vm394, %v388, 0
        %vm398 = vcmask 1041408
        %v400 = vsel %vm398, %v392, 0
        %v403 = vsel %vm398, %v393, 0
        %405 = vmatprep.subr.bf16.mxu0 %v403
        %406 = vmatpush1.bf16.msra.mxu0 %v400
        %407 = vmatprep.subr.bf16.mxu0 0
        %408 = vmatpush1.bf16.msra.mxu0 0
        %409 = vmatprep.subr.bf16.mxu0 0
        %410 = vmatpush1.bf16.msra.mxu0 0
        %411 = vmatprep.subr.bf16.mxu0 0
        %412 = vmatpush1.bf16.msra.mxu0 0
        %413 = vmatprep.subr.bf16.mxu0 0
        %414 = vmatpush1.bf16.msra.mxu0 0
        %415 = vmatprep.subr.bf16.mxu0 0
        %416 = vmatpush1.bf16.msra.mxu0 0
        %417 = vmatprep.subr.bf16.mxu0 0
        %418 = vmatpush1.bf16.msra.mxu0 0
        %419 = vmatprep.subr.bf16.mxu0 0
        %420 = vmatpush1.bf16.msra.mxu0 0
        %421 = vmatprep.subr.bf16.mxu0 0
        %422 = vmatpush1.bf16.msra.mxu0 0
        %423 = vmatprep.subr.bf16.mxu0 0
        %424 = vmatpush1.bf16.msra.mxu0 0
        %425 = vmatprep.subr.bf16.mxu0 0
        %426 = vmatpush1.bf16.msra.mxu0 0
        %427 = vmatprep.subr.bf16.mxu0 0
        %428 = vmatpush1.bf16.msra.mxu0 0
        %429 = vmatprep.subr.bf16.mxu0 0
        %430 = vmatpush1.bf16.msra.mxu0 0
        %431 = vmatprep.subr.bf16.mxu0 0
        %432 = vmatpush1.bf16.msra.mxu0 0
        %433 = vmatprep.subr.bf16.mxu0 0
        %434 = vmatpush1.bf16.msra.mxu0 0
        %435 = vmatprep.subr.bf16.mxu0 0
        %436 = vmatpush1.bf16.msra.mxu0 0
        %437 = vmatprep.mubr.bf16.mxu0 0
        %438 = vmatmul.mubr.bf16.gmra.mrb[0].mxu0 %v396
        %v439 = vpop.f32.mrb[0].mxu0
        %v440 = vadd.f32 0.0, %v439
        %v441 = vpop.f32.mrb[0].mxu0
        %v442 = vadd.f32 0.0, %v441
        %v443 = vpop.f32.mrb[0].mxu0
        %v444 = vpop.f32.mrb[0].mxu0
        %445 = vdwg.mxu0
        %v446 = vld [vmem:[%s2] sm:$0xff]
        %448 = vset.pattern.permute.xlu0 0
        %449 = vperm.xlu0 %448, %v446
        %v450 = vpop.permute.xlu0 %449
        %v452 = vmul.f32 %v440, %v450
        %v453 = vmul.f32 %v442, %v450
        %v454 = vld [vmem:[%s3] sm:$0xff]
        %456 = vset.pattern.permute.xlu0 0
        %457 = vperm.xlu0 %456, %v454
        %v458 = vpop.permute.xlu0 %457
        %v460 = vadd.f32 %v452, %v458
        %v461 = vadd.f32 %v453, %v458
        %v462 = vmax.f32 %v460, 0.0
        %v463 = vmax.f32 %v461, 0.0
        %v464 = vmin.f32 %v462, 6.0
        %v465 = vmin.f32 %v463, 6.0
        %v466 = vld [vmem:[%s4] sm:$0xff]
        %v467 = vld [vmem:[%s5] sm:$0xff]
        %v468 = vld [vmem:[%s5 + $0x8] sm:$0xff]
        %v469 = vld [vmem:[%s5 + $0x10] sm:$0x1]
        %v470 = vld [vmem:[%s5 + $0x18] sm:$0x1]
        %471 = vrot.lane.b32.xlu0 %v464, 17
        %v472 = vpop.permute.xlu0 %471
        %473 = vrot.lane.b32.xlu0 %v465, 17
        %v474 = vpop.permute.xlu0 %473
        %v475 = vlaneseq
        %v476 = vand.u32 %v475, 127
        %vm477 = vcmp.lt.s32.totalorder %v476, 17
        %v478 = vsel %vm477, %v472, %v474
        %v479 = vsel %vm477, %v474, %v472
        %v480 = vlaneseq
        %v481 = vshrl.u32 %v480, 7
        %v482 = vsub.s32 0, %v481
        %v483 = vrot.slane %v467, %v482
        %v484 = vlaneseq
        %v485 = vshrl.u32 %v484, 7
        %v486 = vsub.s32 0, %v485
        %v487 = vrot.slane %v468, %v486
        %v488 = vmul.f32 %v479, %v483
        %v489 = vmul.f32 %v478, %v487
        %491 = vset.pattern.permute.xlu0 0
        %492 = vperm.xlu0 %491, %v466
        %v493 = vpop.permute.xlu0 %492
        %v495 = vmul.f32 %v488, %v493
        %v496 = vmul.f32 %v489, %v493
        %v497 = vadd.f32 %v495, 0.0
        %v498 = vadd.f32 %v496, 0.0
        %499 = vrot.lane.b32.xlu0 %v464, 16
        %v500 = vpop.permute.xlu0 %499
        %501 = vrot.lane.b32.xlu0 %v465, 16
        %v502 = vpop.permute.xlu0 %501
        %vm503 = vcmp.lt.s32.totalorder %v476, 16
        %v504 = vsel %vm503, %v500, %v502
        %v505 = vsel %vm503, %v502, %v500
        %v506 = vlaneseq
        %v507 = vshrl.u32 %v506, 7
        %v508 = vsub.s32 1, %v507
        %v509 = vrot.slane %v467, %v508
        %v510 = vlaneseq
        %v511 = vshrl.u32 %v510, 7
        %v512 = vsub.s32 1, %v511
        %v513 = vrot.slane %v468, %v512
        %v514 = vmul.f32 %v505, %v509
        %v515 = vmul.f32 %v504, %v513
        %516 = vset.pattern.permute.xlu0 1
        %517 = vperm.xlu0 %516, %v466
        %v518 = vpop.permute.xlu0 %517
        %v520 = vmul.f32 %v514, %v518
        %v521 = vmul.f32 %v515, %v518
        %v522 = vadd.f32 %v497, %v520
        %v523 = vadd.f32 %v498, %v521
        %524 = vrot.lane.b32.xlu0 %v464, 15
        %v525 = vpop.permute.xlu0 %524
        %526 = vrot.lane.b32.xlu0 %v465, 15
        %v527 = vpop.permute.xlu0 %526
        %vm528 = vcmp.lt.s32.totalorder %v476, 15
        %v529 = vsel %vm528, %v525, %v527
        %v530 = vsel %vm528, %v527, %v525
        %v531 = vlaneseq
        %v532 = vshrl.u32 %v531, 7
        %v533 = vsub.s32 2, %v532
        %v534 = vrot.slane %v467, %v533
        %v535 = vlaneseq
        %v536 = vshrl.u32 %v535, 7
        %v537 = vsub.s32 2, %v536
        %v538 = vrot.slane %v468, %v537
        %v539 = vmul.f32 %v530, %v534
        %v540 = vmul.f32 %v529, %v538
        %541 = vset.pattern.permute.xlu0 2
        %542 = vperm.xlu0 %541, %v466
        %v543 = vpop.permute.xlu0 %542
        %v545 = vmul.f32 %v539, %v543
        %v546 = vmul.f32 %v540, %v543
        %v547 = vadd.f32 %v522, %v545
        %v548 = vadd.f32 %v523, %v546
        %549 = vrot.lane.b32.xlu0 %v464, 1
        %v550 = vpop.permute.xlu0 %549
        %551 = vrot.lane.b32.xlu0 %v465, 1
        %v552 = vpop.permute.xlu0 %551
        %vm553 = vcmp.lt.s32.totalorder %v476, 1
        %v554 = vsel %vm553, %v550, %v552
        %v555 = vsel %vm553, %v552, %v550
        %v556 = vlaneseq
        %v557 = vshrl.u32 %v556, 7
        %v558 = vsub.s32 3, %v557
        %v559 = vrot.slane %v467, %v558
        %v560 = vlaneseq
        %v561 = vshrl.u32 %v560, 7
        %v562 = vsub.s32 3, %v561
        %v563 = vrot.slane %v468, %v562
        %v564 = vmul.f32 %v555, %v559
        %v565 = vmul.f32 %v554, %v563
        %566 = vset.pattern.permute.xlu0 3
        %567 = vperm.xlu0 %566, %v466
        %v568 = vpop.permute.xlu0 %567
        %v570 = vmul.f32 %v564, %v568
        %v571 = vmul.f32 %v565, %v568
        %v572 = vadd.f32 %v547, %v570
        %v573 = vadd.f32 %v548, %v571
        %574 = vset.pattern.permute.xlu0 4
        %575 = vperm.xlu0 %574, %v466
        %v576 = vpop.permute.xlu0 %575
        %v578 = vmul.f32 %v464, %v576
        %v579 = vmul.f32 %v465, %v576
        %v580 = vadd.f32 %v572, %v578
        %v581 = vadd.f32 %v573, %v579
        %582 = vrot.lane.b32.xlu0 %v464, 127
        %v583 = vpop.permute.xlu0 %582
        %584 = vrot.lane.b32.xlu0 %v465, 127
        %v585 = vpop.permute.xlu0 %584
        %vm586 = vcmp.lt.s32.totalorder %v476, 127
        %v587 = vsel %vm586, %v583, %v585
        %v588 = vsel %vm586, %v585, %v583
        %v589 = vlaneseq
        %v590 = vshrl.u32 %v589, 7
        %v591 = vsub.s32 5, %v590
        %v592 = vrot.slane %v467, %v591
        %v593 = vlaneseq
        %v594 = vshrl.u32 %v593, 7
        %v595 = vsub.s32 5, %v594
        %v596 = vrot.slane %v468, %v595
        %v597 = vmul.f32 %v587, %v592
        %v598 = vmul.f32 %v588, %v596
        %599 = vset.pattern.permute.xlu0 5
        %600 = vperm.xlu0 %599, %v466
        %v601 = vpop.permute.xlu0 %600
        %v603 = vmul.f32 %v597, %v601
        %v604 = vmul.f32 %v598, %v601
        %v605 = vadd.f32 %v580, %v603
        %v606 = vadd.f32 %v581, %v604
        %607 = vrot.lane.b32.xlu0 %v464, 113
        %v608 = vpop.permute.xlu0 %607
        %609 = vrot.lane.b32.xlu0 %v465, 113
        %v610 = vpop.permute.xlu0 %609
        %vm611 = vcmp.lt.s32.totalorder %v476, 113
        %v612 = vsel %vm611, %v608, %v610
        %v613 = vsel %vm611, %v610, %v608
        %v614 = vlaneseq
        %v615 = vshrl.u32 %v614, 7
        %v616 = vsub.s32 6, %v615
        %v617 = vrot.slane %v467, %v616
        %v618 = vlaneseq
        %v619 = vshrl.u32 %v618, 7
        %v620 = vsub.s32 6, %v619
        %v621 = vrot.slane %v468, %v620
        %v622 = vmul.f32 %v612, %v617
        %v623 = vmul.f32 %v613, %v621
        %624 = vset.pattern.permute.xlu0 6
        %625 = vperm.xlu0 %624, %v466
        %v626 = vpop.permute.xlu0 %625
        %v628 = vmul.f32 %v622, %v626
        %v629 = vmul.f32 %v623, %v626
        %v630 = vadd.f32 %v605, %v628
        %v631 = vadd.f32 %v606, %v629
        %632 = vrot.lane.b32.xlu0 %v464, 112
        %v633 = vpop.permute.xlu0 %632
        %634 = vrot.lane.b32.xlu0 %v465, 112
        %v635 = vpop.permute.xlu0 %634
        %vm636 = vcmp.lt.s32.totalorder %v476, 112
        %v637 = vsel %vm636, %v633, %v635
        %v638 = vsel %vm636, %v635, %v633
        %v639 = vlaneseq
        %v640 = vshrl.u32 %v639, 7
        %v641 = vsub.s32 7, %v640
        %v642 = vrot.slane %v467, %v641
        %v643 = vlaneseq
        %v644 = vshrl.u32 %v643, 7
        %v645 = vsub.s32 7, %v644
        %v646 = vrot.slane %v468, %v645
        %v647 = vmul.f32 %v637, %v642
        %v648 = vmul.f32 %v638, %v646
        %649 = vset.pattern.permute.xlu0 7
        %650 = vperm.xlu0 %649, %v466
        %v651 = vpop.permute.xlu0 %650
        %v653 = vmul.f32 %v647, %v651
        %v654 = vmul.f32 %v648, %v651
        %v655 = vadd.f32 %v630, %v653
        %v656 = vadd.f32 %v631, %v654
        %657 = vrot.lane.b32.xlu0 %v464, 111
        %v658 = vpop.permute.xlu0 %657
        %659 = vrot.lane.b32.xlu0 %v465, 111
        %v660 = vpop.permute.xlu0 %659
        %vm661 = vcmp.lt.s32.totalorder %v476, 111
        %v662 = vsel %vm661, %v658, %v660
        %v663 = vsel %vm661, %v660, %v658
        %v664 = vlaneseq
        %v665 = vshrl.u32 %v664, 7
        %v666 = vsub.s32 0, %v665
        %v667 = vrot.slane %v469, %v666
        %v668 = vlaneseq
        %v669 = vshrl.u32 %v668, 7
        %v670 = vsub.s32 0, %v669
        %v671 = vrot.slane %v470, %v670
        %v672 = vmul.f32 %v662, %v667
        %v673 = vmul.f32 %v663, %v671
        %674 = vset.pattern.permute.xlu0 8
        %675 = vperm.xlu0 %674, %v466
        %v676 = vpop.permute.xlu0 %675
        %v678 = vmul.f32 %v672, %v676
        %v679 = vmul.f32 %v673, %v676
        %v680 = vadd.f32 %v655, %v678
        %v681 = vadd.f32 %v656, %v679
        %v682 = vld [vmem:[%s6] sm:$0xff]
        %684 = vset.pattern.permute.xlu0 0
        %685 = vperm.xlu0 %684, %v682
        %v686 = vpop.permute.xlu0 %685
        %v688 = vmul.f32 %v680, %v686
        %v689 = vmul.f32 %v681, %v686
        %v690 = vld [vmem:[%s7] sm:$0xff]
        %692 = vset.pattern.permute.xlu0 0
        %693 = vperm.xlu0 %692, %v690
        %v694 = vpop.permute.xlu0 %693
        %v696 = vadd.f32 %v688, %v694
        %v697 = vadd.f32 %v689, %v694
        %v698 = vmax.f32 %v696, 0.0
        %v699 = vmax.f32 %v697, 0.0
        %v700 = vmin.f32 %v698, 6.0
        %v701 = vmin.f32 %v699, 6.0
        %v702 = vld [vmem:[%s8] sm:$0xf]
        %v703 = vpack.c.bf16 %v702, %v702
        %v704 = vpack.c.bf16 %v700, %v700
        %v705 = vpack.c.bf16 %v701, %v701
        %vm706 = vcmask 64512
        %v708 = vsel %vm706, %v703, 0
        %vm710 = vcmask 1043456
        %v712 = vsel %vm710, %v704, 0
        %v715 = vsel %vm710, %v705, 0
        %717 = vmatprep.subr.bf16.mxu0 %v715
        %718 = vmatpush1.bf16.msra.mxu0 %v712
        %719 = vmatprep.subr.bf16.mxu0 0
        %720 = vmatpush1.bf16.msra.mxu0 0
        %721 = vmatprep.subr.bf16.mxu0 0
        %722 = vmatpush1.bf16.msra.mxu0 0
        %723 = vmatprep.subr.bf16.mxu0 0
        %724 = vmatpush1.bf16.msra.mxu0 0
        %725 = vmatprep.subr.bf16.mxu0 0
        %726 = vmatpush1.bf16.msra.mxu0 0
        %727 = vmatprep.subr.bf16.mxu0 0
        %728 = vmatpush1.bf16.msra.mxu0 0
        %729 = vmatprep.subr.bf16.mxu0 0
        %730 = vmatpush1.bf16.msra.mxu0 0
        %731 = vmatprep.subr.bf16.mxu0 0
        %732 = vmatpush1.bf16.msra.mxu0 0
        %733 = vmatprep.subr.bf16.mxu0 0
        %734 = vmatpush1.bf16.msra.mxu0 0
        %735 = vmatprep.subr.bf16.mxu0 0
        %736 = vmatpush1.bf16.msra.mxu0 0
        %737 = vmatprep.subr.bf16.mxu0 0
        %738 = vmatpush1.bf16.msra.mxu0 0
        %739 = vmatprep.subr.bf16.mxu0 0
        %740 = vmatpush1.bf16.msra.mxu0 0
        %741 = vmatprep.subr.bf16.mxu0 0
        %742 = vmatpush1.bf16.msra.mxu0 0
        %743 = vmatprep.subr.bf16.mxu0 0
        %744 = vmatpush1.bf16.msra.mxu0 0
        %745 = vmatprep.subr.bf16.mxu0 0
        %746 = vmatpush1.bf16.msra.mxu0 0
        %747 = vmatprep.subr.bf16.mxu0 0
        %748 = vmatpush1.bf16.msra.mxu0 0
        %749 = vmatprep.mubr.bf16.mxu0 0
        %750 = vmatmul.mubr.bf16.gmra.mrb[0].mxu0 %v708
        %v751 = vpop.f32.mrb[0].mxu0
        %v752 = vadd.f32 0.0, %v751
        %v753 = vpop.f32.mrb[0].mxu0
        %v754 = vadd.f32 0.0, %v753
        %v755 = vpop.f32.mrb[0].mxu0
        %v756 = vpop.f32.mrb[0].mxu0
        %757 = vdwg.mxu0
        %v758 = vld [vmem:[%s9] sm:$0xf]
        %760 = vset.pattern.permute.xlu0 0
        %761 = vperm.xlu0 %760, %v758
        %v762 = vpop.permute.xlu0 %761
        %v764 = vmul.f32 %v752, %v762
        %v765 = vmul.f32 %v754, %v762
        %v766 = vld [vmem:[%s10] sm:$0xf]
        %768 = vset.pattern.permute.xlu0 0
        %769 = vperm.xlu0 %768, %v766
        %v770 = vpop.permute.xlu0 %769
        %v772 = vadd.f32 %v764, %v770
        %v773 = vadd.f32 %v765, %v770
        %v774 = vadd.f32 %v772, %v386
        %v775 = vadd.f32 %v773, %v390
        %v778 = vcombine.low %v774, %v775
        %780 = vst [vmem:[%s379] sm:$0xff] %v778
        %s781 = sand.u32 %s269, 1
        %s782 = scalar_lea.sflag [#allocation3], %s781
        %s783 = sand.u32 %s269, 1
        %s784 = smul.addr %s783, 8
        %s785 = scalar_lea.vmem [#allocation2], %s784
        // Predicated region
        $region65: #{tpu_custom_call.1} parent=63 // pred_check
          %p786 = pneg %p279
        $region66: #{tpu_custom_call.1} parent=63 // pred_check_branch
          %788 = sbr.rel (%p786) target = $region68
        $region67: #{tpu_custom_call.1} parent=63 // pred_region
          %s790 = ssub.s32 128, 128
          %791 = vsyncadd %s782, %s790
          %s792 = smul.addr %s25, 2
          %s793 = smul.addr %s792, 64
          %s794 = scalar_lea.hbm %s11, %s793
          %s796 = sshll.u32 %s785, 4
          %s797 = int_to_ptr.vmem [resolvable:$true] %s796
          %799 = dma.vmem_to_hbm [thread:$0]  %s797, 128, %s794, %s782
        $region68: #{tpu_custom_call.1} parent=63 // pred_fallthru
          _
      $region64: #{tpu_custom_call.1} parent=5 // pred_fallthru
        _
      %p800 = scmp.le.s32.totalorder 2, %s20
      // Predicated region
      $region69: #{tpu_custom_call.1} parent=5 // pred_check
        %p801 = pneg %p800
      $region70: #{tpu_custom_call.1} parent=5 // pred_check_branch
        %803 = sbr.rel (%p801) target = $region72
      $region71: #{tpu_custom_call.1} parent=5 // pred_region
        %s804 = ssub.s32 %s20, 2
        // Predicated region
        $region73: #{tpu_custom_call.1} parent=71 // pred_check
          %p805 = pneg %p285
        $region74: #{tpu_custom_call.1} parent=71 // pred_check_branch
          %807 = sbr.rel (%p805) target = $region76
        $region75: #{tpu_custom_call.1} parent=71 // pred_region
          %s808 = sand.u32 %s270, 1
          %s809 = scalar_lea.sflag [#allocation3], %s808
          %s810 = sand.u32 %s270, 1
          %s811 = smul.addr %s810, 8
          %s812 = scalar_lea.vmem [#allocation2], %s811
          %813 = dma.done %s809, 128
        $region76: #{tpu_custom_call.1} parent=71 // pred_fallthru
          _
      $region72: #{tpu_custom_call.1} parent=5 // pred_fallthru
        _
    $region6: #{tpu_custom_call.1} parent=1 // loop_footer
      %s24 = sadd.s32 1, %s20
    $region7: #{tpu_custom_call.1} parent=1 // loop_footer_branch
      %19 = sbr.rel target = $region3
    $region8: #{tpu_custom_call.1} parent=1 // loop_exit
      _
    %814 = vsyncpa [#allocation3], 1
    %s815 = scalar_lea.sflag [#allocation3], 1
    %816 = vsyncpa %s815, 1

</llo_original>
